<compile_context>
chip_gen: v6e
topology: v6e:2x2x1
jax: 0.10.0
libtpu: 0.0.40
codegen_flags: <defaults>
</compile_context>

<pallas_src>
import math
import jax
import jax.numpy as jnp
from jax.experimental import pallas as pl
from jax.experimental.pallas import tpu as pltpu


# Tile caps (f32).  Footprint at the caps:
#   2*(tm*tk + tk*tn + tm*tn)*4B + tm*tn*4B  ~= 11 MiB   (<< 48 MiB limit,
#   and well under 1/3 of v7x's 64 MiB physical VMEM).
_TM = 512     # row (sublane) tile
_TN = 512     # feature-out (lane) tile, multiple of 128 -> unmasked stores
_TK = 1024    # contraction tile
_LANE = 128
_VMEM_LIMIT_BYTES = 48 * 1024 * 1024


def _round_up(v, m):
    return -(-v // m) * m


def _pad_axis(a, axis, multiple):
    size = a.shape[axis]
    pad = (-size) % multiple
    if pad == 0:
        return a
    widths = [(0, 0)] * a.ndim
    widths[axis] = (0, pad)
    return jnp.pad(a, widths)


# --------------------------------------------------------------------------
# Kernels
# --------------------------------------------------------------------------

def _mm_acc_bias_kernel(x_ref, w_ref, b_ref, o_ref, acc_ref):
    # x_ref: (tm, tk), w_ref: (tk, tn), b_ref: (1, tn), o_ref: (tm, tn)
    k = pl.program_id(3)

    @pl.when(k == 0)
    def _():
        acc_ref[...] = jnp.zeros_like(acc_ref)

    acc_ref[...] += jnp.dot(x_ref[...], w_ref[...],
                            preferred_element_type=jnp.float32)

    @pl.when(k == pl.num_programs(3) - 1)
    def _():
        o_ref[...] = (acc_ref[...]
                      + b_ref[...].astype(jnp.float32)).astype(o_ref.dtype)


def _mm_acc_nobias_kernel(x_ref, w_ref, o_ref, acc_ref):
    k = pl.program_id(3)

    @pl.when(k == 0)
    def _():
        acc_ref[...] = jnp.zeros_like(acc_ref)

    acc_ref[...] += jnp.dot(x_ref[...], w_ref[...],
                            preferred_element_type=jnp.float32)

    @pl.when(k == pl.num_programs(3) - 1)
    def _():
        o_ref[...] = acc_ref[...].astype(o_ref.dtype)


def _mm_direct_bias_kernel(x_ref, w_ref, b_ref, o_ref):
    # Single K tile: no accumulator round-trip, write the result directly.
    o_ref[...] = (jnp.dot(x_ref[...], w_ref[...],
                          preferred_element_type=jnp.float32)
                  + b_ref[...].astype(jnp.float32)).astype(o_ref.dtype)


def _mm_direct_nobias_kernel(x_ref, w_ref, o_ref):
    o_ref[...] = jnp.dot(x_ref[...], w_ref[...],
                         preferred_element_type=jnp.float32).astype(o_ref.dtype)


# --------------------------------------------------------------------------
# Wrapper
# --------------------------------------------------------------------------

def _ensemble_matmul(x, weight, bias, *, x_shared):
    """x: (M,K) if x_shared else (C,M,K); weight: (C,K,N); bias: (C,N) or None.

    Returns (C, M, N).
    """
    C, K, N = weight.shape
    M = x.shape[-2]
    out_dtype = x.dtype
    itemsize = jnp.dtype(out_dtype).itemsize

    # Tile sizes: full dim when it fits one tile (legal per the
    # (8,128)-or-full-dim rule -> no padding pass), else the aligned cap.
    # N is always rounded up to a multiple of 128 for lane-dense stores.
    tm = M if M <= _TM else _TM
    tk = K if K <= _TK else _TK
    tn = _round_up(N, _LANE) if N <= _TN else _TN

    # Pad only where tiling actually requires it (zero-padding along K is
    # exact for the contraction; padded M rows / N columns are sliced off).
    xp = _pad_axis(_pad_axis(x, -2, tm), -1, tk)
    wp = _pad_axis(_pad_axis(weight, -2, tk), -1, tn)
    Mp, Kp = xp.shape[-2], xp.shape[-1]
    Np = wp.shape[-1]

    nm, nn, nk = Mp // tm, Np // tn, Kp // tk
    single_k = (nk == 1)
    have_bias = bias is not None

    # For the shared-x (2D) path: if x carries more bytes than the weight,
    # prefer keeping the shared x tile resident across the ensemble axis;
    # otherwise keep the weight tile resident across M steps.
    x_bytes = x.size * itemsize
    w_bytes = weight.size * jnp.dtype(weight.dtype).itemsize
    x_resident = x_shared and (x_bytes > w_bytes)

    if single_k:
        if x_resident:
            # (Nj, Mi, C): x index map ignores c -> shared x tile DMA'd once
            # per (i, j) instead of C times.
            grid = (nn, nm, C)
            x_map = lambda j, i, c: (i, 0)
            w_map = lambda j, i, c: (c, 0, j)
            b_map = lambda j, i, c: (c, 0, j)
            o_map = lambda j, i, c: (c, i, j)
        else:
            # (C, Nj, Mi): weight index map ignores i -> weight tile stays
            # resident across consecutive M steps (read ~once from HBM).
            grid = (C, nn, nm)
            if x_shared:
                x_map = lambda c, j, i: (i, 0)
            else:
                x_map = lambda c, j, i: (c, i, 0)
            w_map = lambda c, j, i: (c, 0, j)
            b_map = lambda c, j, i: (c, 0, j)
            o_map = lambda c, j, i: (c, i, j)
        semantics = ("parallel", "parallel", "parallel")
        scratch = []
        kernel = _mm_direct_bias_kernel if have_bias else _mm_direct_nobias_kernel
    else:
        if x_resident:
            grid = (nn, nm, C, nk)
            x_map = lambda j, i, c, k: (i, k)
            w_map = lambda j, i, c, k: (c, k, j)
            b_map = lambda j, i, c, k: (c, 0, j)
            o_map = lambda j, i, c, k: (c, i, j)
        else:
            grid = (C, nn, nm, nk)
            if x_shared:
                x_map = lambda c, j, i, k: (i, k)
            else:
                x_map = lambda c, j, i, k: (c, i, k)
            w_map = lambda c, j, i, k: (c, k, j)
            b_map = lambda c, j, i, k: (c, 0, j)
            o_map = lambda c, j, i, k: (c, i, j)
        semantics = ("parallel", "parallel", "parallel", "arbitrary")
        scratch = [pltpu.VMEM((tm, tn), jnp.float32)]
        kernel = _mm_acc_bias_kernel if have_bias else _mm_acc_nobias_kernel

    if x_shared:
        x_spec = pl.BlockSpec((tm, tk), x_map)
    else:
        x_spec = pl.BlockSpec((None, tm, tk), x_map)
    w_spec = pl.BlockSpec((None, tk, tn), w_map)
    o_spec = pl.BlockSpec((None, tm, tn), o_map)

    in_specs = [x_spec, w_spec]
    operands = [xp, wp]
    bias_bytes = 0
    if have_bias:
        bp = _pad_axis(bias, -1, tn).reshape(C, 1, Np)
        in_specs.append(pl.BlockSpec((None, 1, tn), b_map))
        operands.append(bp)
        bias_bytes = bp.size * itemsize

    cost = pl.CostEstimate(
        flops=int(2 * C * Mp * Kp * Np),
        transcendentals=0,
        bytes_accessed=int(xp.size * itemsize + wp.size * itemsize
                           + bias_bytes + C * Mp * Np * itemsize),
    )

    out = pl.pallas_call(
        kernel,
        out_shape=jax.ShapeDtypeStruct((C, Mp, Np), out_dtype),
        grid_spec=pltpu.PrefetchScalarGridSpec(
            num_scalar_prefetch=0,
            grid=grid,
            in_specs=in_specs,
            out_specs=o_spec,
            scratch_shapes=scratch,
        ),
        compiler_params=pltpu.CompilerParams(
            dimension_semantics=semantics,
            vmem_limit_bytes=_VMEM_LIMIT_BYTES,
        ),
        cost_estimate=cost,
    )(*operands)

    if Mp != M or Np != N:
        out = out[:, :M, :N]
    return out


def ensemble_linear_forward(x, weight, bias=None):
    """Pallas-backed EnsembleLinear.forward.

    weight: (C, F_in, F_out); bias: (C, F_out) or None.
    """
    C, F_in, F_out = weight.shape

    if x.ndim == 2:
        # (B, F_in) shared across ensemble members -> (C, B, F_out)
        return _ensemble_matmul(x, weight, bias, x_shared=True)
    elif x.ndim == 3:
        # (C, B, F_in) -> (C, B, F_out)
        return _ensemble_matmul(x, weight, bias, x_shared=False)
    elif x.ndim == 4:
        # (C, E, B, F_in) @ weight[:, None] -> (C, E, B, F_out)
        Cc, E, B, _ = x.shape
        assert Cc == C
        x3 = x.reshape(C, E * B, F_in)
        out = _ensemble_matmul(x3, weight, bias, x_shared=False)
        return out.reshape(C, E, B, F_out)
    else:
        raise NotImplementedError


def init_ensemble_linear_params(key, in_features, out_features, in_channels=5):
    """Deterministic init mirroring the module's reset_parameters()."""
    kw, kb = jax.random.split(key)
    # kaiming_uniform_(a=sqrt(5)) on a 3D tensor:
    #   fan_in = size(1) * receptive_field = in_features * out_features
    #   gain = sqrt(2 / (1 + a^2)) = 1/sqrt(3); bound = gain * sqrt(3 / fan_in)
    fan_in = in_features * out_features
    w_bound = math.sqrt(1.0 / fan_in)
    weight = jax.random.uniform(
        kw, (in_channels, in_features, out_features),
        minval=-w_bound, maxval=w_bound, dtype=jnp.float32)
    b_bound = 1.0 / math.sqrt(fan_in)
    bias = jax.random.uniform(
        kb, (in_channels, out_features),
        minval=-b_bound, maxval=b_bound, dtype=jnp.float32)
    return weight, bias


if __name__ == "__main__":
    key = jax.random.PRNGKey(0)
    k_param, k_x2, k_x3, k_x4, k_big, k_shared = jax.random.split(key, 6)

    in_channels = 5
    in_features = 32
    out_features = 16
    batch = 8

    weight, bias = init_ensemble_linear_params(
        k_param, in_features, out_features, in_channels)

    HI = jax.lax.Precision.HIGHEST

    # 3D input case: (C, B, F_in) -> (C, B, F_out)   [direct kernel, F_out padded to 128]
    x3 = jax.random.normal(k_x3, (in_channels, batch, in_features), dtype=jnp.float32)
    out3 = jax.block_until_ready(ensemble_linear_forward(x3, weight, bias))
    ref3 = jnp.einsum("cbk,ckn->cbn", x3, weight, precision=HI) + bias[:, None, :]
    assert out3.shape == (in_channels, batch, out_features)
    assert jnp.allclose(out3, ref3, atol=1e-5, rtol=1e-5)

    # 2D input case (x shared across ensemble; weight-resident ordering)
    x2 = jax.random.normal(k_x2, (batch, in_features), dtype=jnp.float32)
    out2 = jax.block_until_ready(ensemble_linear_forward(x2, weight, bias))
    ref2 = jnp.einsum("bk,ckn->cbn", x2, weight, precision=HI) + bias[:, None, :]
    assert out2.shape == (in_channels, batch, out_features)
    assert jnp.allclose(out2, ref2, atol=1e-5, rtol=1e-5)

    # 4D input case: (C, E, B, F_in) -> (C, E, B, F_out)
    E = 2
    x4 = jax.random.normal(k_x4, (in_channels, E, batch, in_features), dtype=jnp.float32)
    out4 = jax.block_until_ready(ensemble_linear_forward(x4, weight, bias))
    ref4 = jnp.einsum("cebk,ckn->cebn", x4, weight, precision=HI) + bias[:, None, None, :]
    assert out4.shape == (in_channels, E, batch, out_features)
    assert jnp.allclose(out4, ref4, atol=1e-5, rtol=1e-5)

    # bias=None path (dedicated kernel, no fabricated zero bias)
    outnb = jax.block_until_ready(ensemble_linear_forward(x3, weight, None))
    refnb = jnp.einsum("cbk,ckn->cbn", x3, weight, precision=HI)
    assert jnp.allclose(outnb, refnb, atol=1e-5, rtol=1e-5)

    # Multi-K accumulator path: F_in > _TK exercises K tiling + padding, and
    # N=130 exercises lane-padding + output slicing.
    C2, B2, K2, N2 = 2, 16, 1300, 130
    kw2, kb2, kx2 = jax.random.split(k_big, 3)
    w2 = jax.random.normal(kw2, (C2, K2, N2), dtype=jnp.float32) * 0.05
    b2 = jax.random.normal(kb2, (C2, N2), dtype=jnp.float32) * 0.05
    xb = jax.random.normal(kx2, (C2, B2, K2), dtype=jnp.float32)
    outb = jax.block_until_ready(ensemble_linear_forward(xb, w2, b2))
    refb = jnp.einsum("cbk,ckn->cbn", xb, w2, precision=HI) + b2[:, None, :]
    assert outb.shape == (C2, B2, N2)
    assert jnp.allclose(outb, refb, atol=1e-3, rtol=1e-3)

    # x-resident branch: shared 2D x larger (in bytes) than the weight -> the
    # grid ordering keeps the shared x tile resident across the ensemble axis.
    C3, B3, K3, N3 = 2, 512, 64, 32
    kw3, kb3, kx3 = jax.random.split(k_shared, 3)
    w3 = jax.random.normal(kw3, (C3, K3, N3), dtype=jnp.float32) * 0.1
    b3 = jax.random.normal(kb3, (C3, N3), dtype=jnp.float32) * 0.1
    xs = jax.random.normal(kx3, (B3, K3), dtype=jnp.float32)
    outs = jax.block_until_ready(ensemble_linear_forward(xs, w3, b3))
    refs = jnp.einsum("bk,ckn->cbn", xs, w3, precision=HI) + b3[:, None, :]
    assert outs.shape == (C3, B3, N3)
    assert jnp.allclose(outs, refs, atol=1e-4, rtol=1e-4)

    print("KERNEL_OK")
</pallas_src>

<mosaic_0001>
module attributes {stable_mosaic.version = 11 : i64} {
  func.func @_mm_direct_bias_kernel(%arg0: i32, %arg1: i32, %arg2: i32, %arg3: memref<1x8x32xf32, #tpu.memory_space<vmem>>, %arg4: memref<1x32x128xf32, #tpu.memory_space<vmem>>, %arg5: memref<1x1x128xf32, #tpu.memory_space<vmem>>, %arg6: memref<1x8x128xf32, #tpu.memory_space<vmem>>) attributes {dimension_semantics = [#tpu.dimension_semantics<parallel>, #tpu.dimension_semantics<parallel>, #tpu.dimension_semantics<parallel>], iteration_bounds = array<i64: 5, 1, 1>, scalar_prefetch = 0 : i64, scratch_operands = 0 : i64, tpu.core_type = #tpu.core_type<tc>, window_params = [{transform_indices = @transform_0, window_bounds = array<i64: 1, 8, 32>}, {transform_indices = @transform_1, window_bounds = array<i64: 1, 32, 128>}, {transform_indices = @transform_2, window_bounds = array<i64: 1, 1, 128>}, {transform_indices = @transform_3, window_bounds = array<i64: 1, 8, 128>}]} {
    %c0 = arith.constant 0 : index
    %c0_0 = arith.constant 0 : index
    %c0_1 = arith.constant 0 : index
    %0 = vector.load %arg3[%c0, %c0_0, %c0_1] : memref<1x8x32xf32, #tpu.memory_space<vmem>>, vector<1x8x32xf32>
    %1 = vector.shape_cast %0 : vector<1x8x32xf32> to vector<8x32xf32>
    %c0_2 = arith.constant 0 : index
    %c0_3 = arith.constant 0 : index
    %c0_4 = arith.constant 0 : index
    %2 = vector.load %arg4[%c0_2, %c0_3, %c0_4] : memref<1x32x128xf32, #tpu.memory_space<vmem>>, vector<1x32x128xf32>
    %3 = vector.shape_cast %2 : vector<1x32x128xf32> to vector<32x128xf32>
    %cst = arith.constant dense<0.000000e+00> : vector<8x128xf32>
    %4 = tpu.matmul %1, %3, %cst {dimension_numbers = #tpu.dot_dimension_numbers<[1], [0], [0], [1], [0, 0, 1, 1], [], []>} : vector<8x32xf32>, vector<32x128xf32>, vector<8x128xf32> -> vector<8x128xf32>
    %c0_5 = arith.constant 0 : index
    %c0_6 = arith.constant 0 : index
    %c0_7 = arith.constant 0 : index
    %5 = vector.load %arg5[%c0_5, %c0_6, %c0_7] : memref<1x1x128xf32, #tpu.memory_space<vmem>>, vector<1x1x128xf32>
    %6 = vector.shape_cast %5 : vector<1x1x128xf32> to vector<1x128xf32>
    %7 = vector.broadcast %6 : vector<1x128xf32> to vector<8x128xf32>
    %8 = arith.addf %4, %7 : vector<8x128xf32>
    %c0_8 = arith.constant 0 : index
    %c0_9 = arith.constant 0 : index
    %c0_10 = arith.constant 0 : index
    %9 = vector.load %arg6[%c0_8, %c0_9, %c0_10] : memref<1x8x128xf32, #tpu.memory_space<vmem>>, vector<1x8x128xf32>
    %10 = vector.shape_cast %9 : vector<1x8x128xf32> to vector<8x128xf32>
    %11 = vector.shape_cast %8 : vector<8x128xf32> to vector<1x8x128xf32>
    tpu.vector_store %arg6[%c0_8, %c0_9, %c0_10], %11 {strides = array<i32>} : memref<1x8x128xf32, #tpu.memory_space<vmem>>, vector<1x8x128xf32>,
    return
  }
  func.func @transform_0(%arg0: i32, %arg1: i32, %arg2: i32) -> (i32, i32, i32) {
    %c0_i32 = arith.constant 0 : i32
    %c0_i32_0 = arith.constant 0 : i32
    return %arg0, %arg2, %c0_i32 : i32, i32, i32
  }
  func.func @transform_1(%arg0: i32, %arg1: i32, %arg2: i32) -> (i32, i32, i32) {
    %c0_i32 = arith.constant 0 : i32
    %c0_i32_0 = arith.constant 0 : i32
    return %arg0, %c0_i32, %arg1 : i32, i32, i32
  }
  func.func @transform_2(%arg0: i32, %arg1: i32, %arg2: i32) -> (i32, i32, i32) {
    %c0_i32 = arith.constant 0 : i32
    %c0_i32_0 = arith.constant 0 : i32
    return %arg0, %c0_i32, %arg1 : i32, i32, i32
  }
  func.func @transform_3(%arg0: i32, %arg1: i32, %arg2: i32) -> (i32, i32, i32) {
    %c0_i32 = arith.constant 0 : i32
    return %arg0, %arg2, %arg1 : i32, i32, i32
  }
}

</mosaic_0001>

<llo_original>
// kernel: tpu_custom_call.1
$region0: #{tpu_custom_call.1}
  #allocation0 [shape = 'u32[]', space=smem, size = 0x4, offset = 0x4, fixed_abs, tag = 'smem constant byte address 0x4 - core index']
  #allocation1 [shape = 'u32[144,128]{1,0:T(1,128)}', space=vmem, size = 0x12000, scoped, tag = 'internal scratch']
  %s0 = inlined_call_operand.hbm [shape: f32[5,8,32], index: 0, kind: input, shape index: {}]
  %s1 = inlined_call_operand.hbm [shape: f32[5,32,128], index: 1, kind: input, shape index: {}]
  %s2 = inlined_call_operand.hbm [shape: f32[5,1,128], index: 2, kind: input, shape index: {}]
  %s3 = inlined_call_operand.hbm [shape: f32[5,8,128], index: 3, kind: output, shape index: {}]
  %s4 = sld [smem:[#allocation0]]
  $region57: #{tpu_custom_call.1} parent=0
    _
  %s6 = ssub.s32 1, %s4
  %s7 = scalar_select 0, %s6, %s4
  $region1: #{tpu_custom_call.1} parent=0
    #allocation2 [shape = 'u8[8192]{0}', space=vmem, size = 0x2000, scoped, tag = 'input window, operand 0']
    #allocation3 [shape = 's32[2]{0}', space=sflag, size = 0x8, scoped, tag = 'scoped memory for tpu_custom_call.1']
    #allocation4 [shape = 's32[2]{0}', space=sflag, size = 0x8, scoped, tag = 'scoped memory for tpu_custom_call.1']
    #allocation5 [shape = 'u8[32768]{0}', space=vmem, size = 0x8000, scoped, tag = 'input window, operand 1']
    #allocation6 [shape = 's32[2]{0}', space=sflag, size = 0x8, scoped, tag = 'scoped memory for tpu_custom_call.1']
    #allocation7 [shape = 'u8[1024]{0}', space=vmem, size = 0x400, scoped, tag = 'input window, operand 2']
    #allocation8 [shape = 'u8[8192]{0}', space=vmem, size = 0x2000, scoped, tag = 'output window, operand 0']
    %8 = vsyncpa [#allocation3], 0
    %s9 = scalar_lea.sflag [#allocation3], 1
    %10 = vsyncpa %s9, 0
    %11 = vsyncpa [#allocation6], 0
    %s12 = scalar_lea.sflag [#allocation6], 1
    %13 = vsyncpa %s12, 0
    %14 = vsyncpa [#allocation4], 0
    %s15 = scalar_lea.sflag [#allocation4], 1
    %16 = vsyncpa %s15, 0
    loop: start=0, step=1, limit=7
    $region2: #{tpu_custom_call.1} parent=1 // loop_pre_header
      _
    $region3: #{tpu_custom_call.1} parent=1 // loop_header
      %s18 = sphi 0, %s22
      %p19 = scmp.ge.s32.totalorder %s18, 7
      %s25 = sphi 0, %s44
      %s26 = sphi 0, %s40
      %s27 = sphi 0, %s36
      %s28 = sphi 0, %s25
      %s29 = sphi 0, %s26
      %s30 = sphi 0, %s27
      %s31 = sphi 0, %s28
      %s32 = sphi 0, %s29
      %s33 = sphi 0, %s30
      %s49 = sphi 0, %s51
      %s52 = sphi 0, %s49
      %s53 = sphi 0, %s52
      %s69 = sphi 0, %s53
      %s77 = sphi 0, %s79
      %s80 = sphi 0, %s77
      %s81 = sphi 0, %s80
      %s97 = sphi 0, %s81
      %s105 = sphi 0, %s107
      %s108 = sphi 0, %s105
      %s109 = sphi 0, %s108
      %s125 = sphi 0, %s109
      %s135 = sphi 0, %s137
      %s138 = sphi 0, %s135
      %s139 = sphi 0, %s138
      %s155 = sphi 0, %s139
    $region4: #{tpu_custom_call.1} parent=1 // loop_header_branch
      %21 = sbr.rel (%p19) target = $region8
    $region5: #{tpu_custom_call.1} parent=1 // loop_body
      %s23 = ssub.s32 %s18, 1
      %s24 = ssub.s32 %s18, 2
      %s34 = sadd.s32 1, %s27
      %p35 = scmp.ge.s32.totalorder %s34, 1
      %s36 = scalar_select %p35, 0, %s34
      %s37 = sadd.s32 1, %s26
      %s38 = scalar_select %p35, %s37, %s26
      %p39 = scmp.ge.s32.totalorder %s38, 1
      %s40 = scalar_select %p39, 0, %s38
      %s41 = sadd.s32 1, %s25
      %s42 = scalar_select %p39, %s41, %s25
      %p43 = scmp.ge.s32.totalorder %s42, 5
      %s44 = scalar_select %p43, 0, %s42
      %s45 = ssub.s32 %s25, %s44
      %s46 = ssub.s32 %s27, %s36
      %s47 = sor.u32 %s45, %s46
      %p48 = scmp.eq.s32.totalorder %s47, 0
      %s50 = sadd.s32 %s49, 1
      %s51 = scalar_select %p48, %s49, %s50
      %p54 = pneg %p48
      %p55 = scmp.eq.s32.totalorder %s18, 4
      %p56 = por %p54, %p55
      %p57 = scmp.ne.s32.totalorder %s49, %s52
      %p58 = scmp.eq.s32.totalorder %s18, 0
      %p59 = por %p57, %p58
      %p60 = scmp.ne.s32.totalorder %s49, %s52
      %p61 = scmp.eq.s32.totalorder %s23, 4
      %p62 = por %p60, %p61
      %p63 = scmp.ne.s32.totalorder %s52, %s53
      %p64 = scmp.eq.s32.totalorder %s23, 0
      %p65 = por %p63, %p64
      %p66 = scmp.ne.s32.totalorder %s52, %s53
      %p67 = scmp.eq.s32.totalorder %s24, 4
      %p68 = por %p66, %p67
      %p70 = scmp.ne.s32.totalorder %s53, %s69
      %p71 = scmp.eq.s32.totalorder %s24, 0
      %p72 = por %p70, %p71
      %s73 = ssub.s32 %s25, %s44
      %s74 = ssub.s32 %s26, %s40
      %s75 = sor.u32 %s73, %s74
      %p76 = scmp.eq.s32.totalorder %s75, 0
      %s78 = sadd.s32 %s77, 1
      %s79 = scalar_select %p76, %s77, %s78
      %p82 = pneg %p76
      %p83 = scmp.eq.s32.totalorder %s18, 4
      %p84 = por %p82, %p83
      %p85 = scmp.ne.s32.totalorder %s77, %s80
      %p86 = scmp.eq.s32.totalorder %s18, 0
      %p87 = por %p85, %p86
      %p88 = scmp.ne.s32.totalorder %s77, %s80
      %p89 = scmp.eq.s32.totalorder %s23, 4
      %p90 = por %p88, %p89
      %p91 = scmp.ne.s32.totalorder %s80, %s81
      %p92 = scmp.eq.s32.totalorder %s23, 0
      %p93 = por %p91, %p92
      %p94 = scmp.ne.s32.totalorder %s80, %s81
      %p95 = scmp.eq.s32.totalorder %s24, 4
      %p96 = por %p94, %p95
      %p98 = scmp.ne.s32.totalorder %s81, %s97
      %p99 = scmp.eq.s32.totalorder %s24, 0
      %p100 = por %p98, %p99
      %s101 = ssub.s32 %s25, %s44
      %s102 = ssub.s32 %s26, %s40
      %s103 = sor.u32 %s101, %s102
      %p104 = scmp.eq.s32.totalorder %s103, 0
      %s106 = sadd.s32 %s105, 1
      %s107 = scalar_select %p104, %s105, %s106
      %p110 = pneg %p104
      %p111 = scmp.eq.s32.totalorder %s18, 4
      %p112 = por %p110, %p111
      %p113 = scmp.ne.s32.totalorder %s105, %s108
      %p114 = scmp.eq.s32.totalorder %s18, 0
      %p115 = por %p113, %p114
      %p116 = scmp.ne.s32.totalorder %s105, %s108
      %p117 = scmp.eq.s32.totalorder %s23, 4
      %p118 = por %p116, %p117
      %p119 = scmp.ne.s32.totalorder %s108, %s109
      %p120 = scmp.eq.s32.totalorder %s23, 0
      %p121 = por %p119, %p120
      %p122 = scmp.ne.s32.totalorder %s108, %s109
      %p123 = scmp.eq.s32.totalorder %s24, 4
      %p124 = por %p122, %p123
      %p126 = scmp.ne.s32.totalorder %s109, %s125
      %p127 = scmp.eq.s32.totalorder %s24, 0
      %p128 = por %p126, %p127
      %s129 = ssub.s32 %s25, %s44
      %s130 = ssub.s32 %s27, %s36
      %s131 = sor.u32 %s129, %s130
      %s132 = ssub.s32 %s26, %s40
      %s133 = sor.u32 %s131, %s132
      %p134 = scmp.eq.s32.totalorder %s133, 0
      %s136 = sadd.s32 %s135, 1
      %s137 = scalar_select %p134, %s135, %s136
      %p140 = pneg %p134
      %p141 = scmp.eq.s32.totalorder %s18, 4
      %p142 = por %p140, %p141
      %p143 = scmp.ne.s32.totalorder %s135, %s138
      %p144 = scmp.eq.s32.totalorder %s18, 0
      %p145 = por %p143, %p144
      %p146 = scmp.ne.s32.totalorder %s135, %s138
      %p147 = scmp.eq.s32.totalorder %s23, 4
      %p148 = por %p146, %p147
      %p149 = scmp.ne.s32.totalorder %s138, %s139
      %p150 = scmp.eq.s32.totalorder %s23, 0
      %p151 = por %p149, %p150
      %p152 = scmp.ne.s32.totalorder %s138, %s139
      %p153 = scmp.eq.s32.totalorder %s24, 4
      %p154 = por %p152, %p153
      %p156 = scmp.ne.s32.totalorder %s139, %s155
      %p157 = scmp.eq.s32.totalorder %s24, 0
      %p158 = por %p156, %p157
      %p159 = scmp.le.s32.totalorder 1, %s18
      %p160 = scmp.lt.s32.totalorder %s18, 6
      %p161 = pnand %p159, %p160
      %p162 = pneg %p161
      // Predicated region
      $region9: #{tpu_custom_call.1} parent=5 // pred_check
        _
      $region10: #{tpu_custom_call.1} parent=5 // pred_check_branch
        %164 = sbr.rel (%p161) target = $region12
      $region11: #{tpu_custom_call.1} parent=5 // pred_region
        %s165 = ssub.s32 %s18, 1
      $region12: #{tpu_custom_call.1} parent=5 // pred_fallthru
        _
      %p166 = scmp.lt.s32.totalorder %s18, 5
      // Predicated region
      $region13: #{tpu_custom_call.1} parent=5 // pred_check
        %p167 = pneg %p166
      $region14: #{tpu_custom_call.1} parent=5 // pred_check_branch
        %169 = sbr.rel (%p167) target = $region16
      $region15: #{tpu_custom_call.1} parent=5 // pred_region
        // Predicated region
        $region17: #{tpu_custom_call.1} parent=15 // pred_check
          %p170 = pneg %p59
        $region18: #{tpu_custom_call.1} parent=15 // pred_check_branch
          %172 = sbr.rel (%p170) target = $region20
        $region19: #{tpu_custom_call.1} parent=15 // pred_region
          %s173 = sand.u32 %s49, 1
          %s174 = scalar_lea.sflag [#allocation3], %s173
          %s175 = sand.u32 %s49, 1
          %s176 = smul.addr %s175, 8
          %s177 = scalar_lea.vmem [#allocation2], %s176
          %s179 = ssub.s32 128, 128
          %180 = vsyncadd %s174, %s179
          %s181 = sadd.s32 %s27, %s25
          %s182 = smul.addr %s181, 128
          %s183 = scalar_lea.hbm %s0, %s182
          %s185 = sshll.u32 %s177, 4
          %s186 = int_to_ptr.vmem [resolvable:$true] %s185
          %188 = dma.hbm_to_vmem [thread:$0]  %s183, 128, %s186, %s174
        $region20: #{tpu_custom_call.1} parent=15 // pred_fallthru
          _
        // Predicated region
        $region21: #{tpu_custom_call.1} parent=15 // pred_check
          %p189 = pneg %p87
        $region22: #{tpu_custom_call.1} parent=15 // pred_check_branch
          %191 = sbr.rel (%p189) target = $region24
        $region23: #{tpu_custom_call.1} parent=15 // pred_region
          %s192 = sand.u32 %s18, 1
          %s193 = scalar_lea.sflag [#allocation6], %s192
          %s194 = sand.u32 %s77, 1
          %s195 = smul.addr %s194, 32
          %s196 = scalar_lea.vmem [#allocation5], %s195
          %s198 = ssub.s32 512, 512
          %199 = vsyncadd %s193, %s198
          %s200 = smul.addr %s25, 4
          %s201 = sadd.s32 %s26, %s200
          %s202 = smul.addr %s201, 128
          %s203 = scalar_lea.hbm %s1, %s202
          %s204 = sshll.u32 %s196, 4
          %s205 = int_to_ptr.vmem [resolvable:$true] %s204
          %210 = dma.hbm_to_vmem [thread:$0]  %s203, 512, %s205, %s193, 128, 128, 8
        $region24: #{tpu_custom_call.1} parent=15 // pred_fallthru
          _
        // Predicated region
        $region25: #{tpu_custom_call.1} parent=15 // pred_check
          %p211 = pneg %p115
        $region26: #{tpu_custom_call.1} parent=15 // pred_check_branch
          %213 = sbr.rel (%p211) target = $region28
        $region27: #{tpu_custom_call.1} parent=15 // pred_region
          %s214 = sand.u32 %s18, 1
          %s215 = scalar_lea.sflag [#allocation6], %s214
          %s216 = sand.u32 %s105, 1
          %s217 = scalar_lea.vmem [#allocation7], %s216
          %s219 = ssub.s32 16, 16
          %220 = vsyncadd %s215, %s219
          %s221 = sadd.s32 %s26, %s25
          %s222 = smul.addr %s221, 16
          %s223 = scalar_lea.hbm %s2, %s222
          %s225 = sshll.u32 %s217, 4
          %s226 = int_to_ptr.vmem [resolvable:$true] %s225
          %228 = dma.hbm_to_vmem [thread:$0]  %s223, 16, %s226, %s215
        $region28: #{tpu_custom_call.1} parent=15 // pred_fallthru
          _
      $region16: #{tpu_custom_call.1} parent=5 // pred_fallthru
        _
      %p229 = scmp.le.s32.totalorder 1, %s18
      %p230 = scmp.lt.s32.totalorder %s18, 6
      %p231 = pnand %p229, %p230
      %p232 = pneg %p231
      // Predicated region
      $region29: #{tpu_custom_call.1} parent=5 // pred_check
        _
      $region30: #{tpu_custom_call.1} parent=5 // pred_check_branch
        %234 = sbr.rel (%p231) target = $region32
      $region31: #{tpu_custom_call.1} parent=5 // pred_region
        %s235 = ssub.s32 %s18, 1
        %s236 = sand.u32 %s52, 1
        %s237 = scalar_lea.sflag [#allocation3], %s236
        %s238 = sand.u32 %s52, 1
        %s239 = smul.addr %s238, 8
        %s240 = scalar_lea.vmem [#allocation2], %s239
        // Predicated region
        $region33: #{tpu_custom_call.1} parent=31 // pred_check
          %p241 = pneg %p65
        $region34: #{tpu_custom_call.1} parent=31 // pred_check_branch
          %243 = sbr.rel (%p241) target = $region36
        $region35: #{tpu_custom_call.1} parent=31 // pred_region
          %244 = dma.done %s237, 128
        $region36: #{tpu_custom_call.1} parent=31 // pred_fallthru
          _
        %s245 = sand.u32 %s23, 1
        %s246 = scalar_lea.sflag [#allocation6], %s245
        %s247 = sand.u32 %s80, 1
        %s248 = smul.addr %s247, 32
        %s249 = scalar_lea.vmem [#allocation5], %s248
        // Predicated region
        $region37: #{tpu_custom_call.1} parent=31 // pred_check
          %p250 = pneg %p93
        $region38: #{tpu_custom_call.1} parent=31 // pred_check_branch
          %252 = sbr.rel (%p250) target = $region40
        $region39: #{tpu_custom_call.1} parent=31 // pred_region
          %253 = dma.done %s246, 512
        $region40: #{tpu_custom_call.1} parent=31 // pred_fallthru
          _
        %s254 = sand.u32 %s23, 1
        %s255 = scalar_lea.sflag [#allocation6], %s254
        %s256 = sand.u32 %s108, 1
        %s257 = scalar_lea.vmem [#allocation7], %s256
        // Predicated region
        $region41: #{tpu_custom_call.1} parent=31 // pred_check
          %p258 = pneg %p121
        $region42: #{tpu_custom_call.1} parent=31 // pred_check_branch
          %260 = sbr.rel (%p258) target = $region44
        $region43: #{tpu_custom_call.1} parent=31 // pred_region
          %261 = dma.done %s255, 16
        $region44: #{tpu_custom_call.1} parent=31 // pred_fallthru
          _
        %s262 = sand.u32 %s52, 1
        %s263 = scalar_lea.sflag [#allocation3], %s262
        %s264 = sand.u32 %s52, 1
        %s265 = smul.addr %s264, 8
        %s266 = scalar_lea.vmem [#allocation2], %s265
        %p267 = pneg %p65
        %p268 = pneg %p62
        %s269 = sand.u32 %s23, 1
        %s270 = scalar_lea.sflag [#allocation6], %s269
        %s271 = sand.u32 %s80, 1
        %s272 = smul.addr %s271, 32
        %s273 = scalar_lea.vmem [#allocation5], %s272
        %p274 = pneg %p93
        %p275 = pneg %p90
        %s276 = sand.u32 %s23, 1
        %s277 = scalar_lea.sflag [#allocation6], %s276
        %s278 = sand.u32 %s108, 1
        %s279 = scalar_lea.vmem [#allocation7], %s278
        %p280 = pneg %p121
        %p281 = pneg %p118
        %p282 = pneg %p151
        %p283 = pneg %p148
        %s284 = sand.u32 %s138, 1
        %s285 = scalar_lea.sflag [#allocation4], %s284
        %s286 = sand.u32 %s138, 1
        %s287 = smul.addr %s286, 8
        %s288 = scalar_lea.vmem [#allocation8], %s287
        %v289 = vld [vmem:[%s240] sm:$0xff]
        %v290 = vld [vmem:[%s249] sm:$0xff]
        %v291 = vld [vmem:[%s249 + $0x8] sm:$0xff]
        %v292 = vld [vmem:[%s249 + $0x10] sm:$0xff]
        %v293 = vld [vmem:[%s249 + $0x18] sm:$0xff]
        %v294 = vld [vmem:[%s257] sm:$0x1]
        %v296 = vlaneseq
        %v297 = vshrl.u32 %v296, 7
        %v298 = vsub.s32 0, %v297
        %v299 = vrot.slane %v294, %v298
        %vm301 = vcmask 261120
        %v303 = vsel %vm301, %v289, 0
        %305 = vmatprep.subr.mxu0 0.0
        %306 = vmatpush1.msra.mxu0 0.0
        %307 = vmatprep.subr.mxu0 0.0
        %308 = vmatpush1.msra.mxu0 0.0
        %309 = vmatprep.subr.mxu0 0.0
        %310 = vmatpush1.msra.mxu0 0.0
        %311 = vmatprep.subr.mxu0 0.0
        %312 = vmatpush1.msra.mxu0 0.0
        %313 = vmatprep.subr.mxu0 0.0
        %314 = vmatpush1.msra.mxu0 0.0
        %315 = vmatprep.subr.mxu0 0.0
        %316 = vmatpush1.msra.mxu0 0.0
        %317 = vmatprep.subr.mxu0 0.0
        %318 = vmatpush1.msra.mxu0 0.0
        %319 = vmatprep.subr.mxu0 0.0
        %320 = vmatpush1.msra.mxu0 0.0
        %321 = vmatprep.subr.mxu0 0.0
        %322 = vmatpush1.msra.mxu0 0.0
        %323 = vmatprep.subr.mxu0 0.0
        %324 = vmatpush1.msra.mxu0 0.0
        %325 = vmatprep.subr.mxu0 0.0
        %326 = vmatpush1.msra.mxu0 0.0
        %327 = vmatprep.subr.mxu0 0.0
        %328 = vmatpush1.msra.mxu0 0.0
        %329 = vmatprep.subr.mxu0 0.0
        %330 = vmatpush1.msra.mxu0 %v293
        %331 = vmatprep.subr.mxu0 0.0
        %332 = vmatpush1.msra.mxu0 %v292
        %333 = vmatprep.subr.mxu0 0.0
        %334 = vmatpush1.msra.mxu0 %v291
        %335 = vmatprep.subr.mxu0 0.0
        %336 = vmatpush1.msra.mxu0 %v290
        %337 = vmatprep.subr.mxu0 0.0
        %338 = vmatpush2.msra.mxu0 0.0
        %339 = vmatprep.subr.mxu0 0.0
        %340 = vmatpush2.msra.mxu0 0.0
        %341 = vmatprep.subr.mxu0 0.0
        %342 = vmatpush2.msra.mxu0 0.0
        %343 = vmatprep.subr.mxu0 0.0
        %344 = vmatpush2.msra.mxu0 0.0
        %345 = vmatprep.subr.mxu0 0.0
        %346 = vmatpush2.msra.mxu0 0.0
        %347 = vmatprep.subr.mxu0 0.0
        %348 = vmatpush2.msra.mxu0 0.0
        %349 = vmatprep.subr.mxu0 0.0
        %350 = vmatpush2.msra.mxu0 0.0
        %351 = vmatprep.subr.mxu0 0.0
        %352 = vmatpush2.msra.mxu0 0.0
        %353 = vmatprep.subr.mxu0 0.0
        %354 = vmatpush2.msra.mxu0 0.0
        %355 = vmatprep.subr.mxu0 0.0
        %356 = vmatpush2.msra.mxu0 0.0
        %357 = vmatprep.subr.mxu0 0.0
        %358 = vmatpush2.msra.mxu0 0.0
        %359 = vmatprep.subr.mxu0 0.0
        %360 = vmatpush2.msra.mxu0 0.0
        %361 = vmatprep.subr.mxu0 0.0
        %362 = vmatpush2.msra.mxu0 0.0
        %363 = vmatprep.subr.mxu0 0.0
        %364 = vmatpush2.msra.mxu0 0.0
        %365 = vmatprep.subr.mxu0 0.0
        %366 = vmatpush2.msra.mxu0 0.0
        %367 = vmatprep.subr.mxu0 0.0
        %368 = vmatpush2.msra.mxu0 0.0
        %369 = vmatprep.mubr.f32.mxu0 0.0
        %370 = vmatmul.mubr.f32.gmra.mxu0 %v303
        %v371 = vpop.f32.mrf.mxu0
        %v372 = vadd.f32 %v299, %v371
        %v373 = vpop.f32.mrf.mxu0
        %374 = vdwg.mxu0
        %375 = vst [vmem:[%s288] sm:$0xff] %v372
        %s376 = sand.u32 %s138, 1
        %s377 = scalar_lea.sflag [#allocation4], %s376
        %s378 = sand.u32 %s138, 1
        %s379 = smul.addr %s378, 8
        %s380 = scalar_lea.vmem [#allocation8], %s379
        // Predicated region
        $region45: #{tpu_custom_call.1} parent=31 // pred_check
          %p381 = pneg %p148
        $region46: #{tpu_custom_call.1} parent=31 // pred_check_branch
          %383 = sbr.rel (%p381) target = $region48
        $region47: #{tpu_custom_call.1} parent=31 // pred_region
          %s385 = ssub.s32 128, 128
          %386 = vsyncadd %s377, %s385
          %s387 = sadd.s32 %s29, %s30
          %s388 = sadd.s32 %s387, %s28
          %s389 = smul.addr %s388, 128
          %s390 = scalar_lea.hbm %s3, %s389
          %s392 = sshll.u32 %s380, 4
          %s393 = int_to_ptr.vmem [resolvable:$true] %s392
          %395 = dma.vmem_to_hbm [thread:$0]  %s393, 128, %s390, %s377
        $region48: #{tpu_custom_call.1} parent=31 // pred_fallthru
          _
      $region32: #{tpu_custom_call.1} parent=5 // pred_fallthru
        _
      %p396 = scmp.le.s32.totalorder 2, %s18
      // Predicated region
      $region49: #{tpu_custom_call.1} parent=5 // pred_check
        %p397 = pneg %p396
      $region50: #{tpu_custom_call.1} parent=5 // pred_check_branch
        %399 = sbr.rel (%p397) target = $region52
      $region51: #{tpu_custom_call.1} parent=5 // pred_region
        %s400 = ssub.s32 %s18, 2
        // Predicated region
        $region53: #{tpu_custom_call.1} parent=51 // pred_check
          %p401 = pneg %p154
        $region54: #{tpu_custom_call.1} parent=51 // pred_check_branch
          %403 = sbr.rel (%p401) target = $region56
        $region55: #{tpu_custom_call.1} parent=51 // pred_region
          %s404 = sand.u32 %s139, 1
          %s405 = scalar_lea.sflag [#allocation4], %s404
          %s406 = sand.u32 %s139, 1
          %s407 = smul.addr %s406, 8
          %s408 = scalar_lea.vmem [#allocation8], %s407
          %409 = dma.done %s405, 128
        $region56: #{tpu_custom_call.1} parent=51 // pred_fallthru
          _
      $region52: #{tpu_custom_call.1} parent=5 // pred_fallthru
        _
    $region6: #{tpu_custom_call.1} parent=1 // loop_footer
      %s22 = sadd.s32 1, %s18
    $region7: #{tpu_custom_call.1} parent=1 // loop_footer_branch
      %17 = sbr.rel target = $region3
    $region8: #{tpu_custom_call.1} parent=1 // loop_exit
      _
    %410 = vsyncpa [#allocation3], 1
    %s411 = scalar_lea.sflag [#allocation3], 1
    %412 = vsyncpa %s411, 1
    %413 = vsyncpa [#allocation6], 1
    %s414 = scalar_lea.sflag [#allocation6], 1
    %415 = vsyncpa %s414, 1
    %416 = vsyncpa [#allocation4], 1
    %s417 = scalar_lea.sflag [#allocation4], 1
    %418 = vsyncpa %s417, 1

</llo_original>
